<compile_context>
chip_gen: v7x
topology: tpu7x:2x2x1
jax: 0.10.0
libtpu: 0.0.40
codegen_flags: <defaults>
</compile_context>

<pallas_src>
import jax
import jax.numpy as jnp
import numpy as np
from jax.experimental import pallas as pl
from jax.experimental.pallas import tpu as pltpu

LANE = 128      # TPU lane width: padded feature / hidden / output width
SUBLANE = 8     # f32 sublane width: batch padded to a multiple of this


# ----------------------------------------------------------------------------
# Pallas kernel: one grid step == one 3-layer MLP (all operands lane-dense)
# ----------------------------------------------------------------------------
def _fused_mlp3_kernel(obs_ref, act_ref, w1o_ref, w1a_ref, b1_ref,
                       w2_ref, b2_ref, w3_ref, b3_ref, o_ref):
    h1 = (jnp.dot(obs_ref[...], w1o_ref[...], preferred_element_type=jnp.float32)
          + jnp.dot(act_ref[...], w1a_ref[...], preferred_element_type=jnp.float32)
          + b1_ref[...])
    h1 = jnp.maximum(h1, 0.0)
    h2 = jnp.dot(h1, w2_ref[...], preferred_element_type=jnp.float32) + b2_ref[...]
    h2 = jnp.maximum(h2, 0.0)
    out = jnp.dot(h2, w3_ref[...], preferred_element_type=jnp.float32) + b3_ref[...]
    o_ref[...] = out.astype(o_ref.dtype)


def fused_critic_mlps(obs_p, act_p, packed):
    """Run N independent 3-layer MLPs over the shared (obs, action) pair.

    obs_p, act_p : [B_pad, LANE] f32 (zero-padded on the feature axis)
    packed       : stacked, zero-padded params, each with leading dim N
    returns      : [N, B_pad, LANE] f32 (real output lives in column 0)
    """
    w1o, w1a, b1, w2, b2, w3, b3 = packed
    n_nets = w1o.shape[0]
    b_pad = obs_p.shape[0]

    shared = pl.BlockSpec((b_pad, LANE), lambda n: (0, 0))

    def per_net(rows, cols):
        return pl.BlockSpec((pl.Squeezed(), rows, cols), lambda n: (n, 0, 0))

    return pl.pallas_call(
        _fused_mlp3_kernel,
        out_shape=jax.ShapeDtypeStruct((n_nets, b_pad, LANE), jnp.float32),
        grid_spec=pltpu.PrefetchScalarGridSpec(
            num_scalar_prefetch=0,
            grid=(n_nets,),
            in_specs=[
                shared,                 # obs (grid-invariant, stays resident)
                shared,                 # action
                per_net(LANE, LANE),    # W1_obs
                per_net(LANE, LANE),    # W1_act
                per_net(1, LANE),       # b1
                per_net(LANE, LANE),    # W2
                per_net(1, LANE),       # b2
                per_net(LANE, LANE),    # W3
                per_net(1, LANE),       # b3
            ],
            out_specs=per_net(b_pad, LANE),
        ),
        compiler_params=pltpu.CompilerParams(
            dimension_semantics=("parallel",)),   # nets shard across v7x's 2 TCs
    )(obs_p, act_p, w1o, w1a, b1, w2, b2, w3, b3)


# ----------------------------------------------------------------------------
# Parameter construction + packing (deterministic, synthetic)
# ----------------------------------------------------------------------------
def _init_mlp_params(key, d_in, hidden, d_out=1):
    k1, k2, k3, k4, k5, k6 = jax.random.split(key, 6)
    s1 = 1.0 / np.sqrt(d_in)
    s2 = 1.0 / np.sqrt(hidden)
    w1 = jax.random.uniform(k1, (d_in, hidden), jnp.float32, -s1, s1)
    b1 = jax.random.uniform(k2, (1, hidden), jnp.float32, -s1, s1)
    w2 = jax.random.uniform(k3, (hidden, hidden), jnp.float32, -s2, s2)
    b2 = jax.random.uniform(k4, (1, hidden), jnp.float32, -s2, s2)
    w3 = jax.random.uniform(k5, (hidden, d_out), jnp.float32, -s2, s2)
    b3 = jax.random.uniform(k6, (1, d_out), jnp.float32, -s2, s2)
    return (w1, b1, w2, b2, w3, b3)


def _pad_to(a, rows, cols):
    out = jnp.zeros((rows, cols), a.dtype)
    return out.at[: a.shape[0], : a.shape[1]].set(a)


def _pack_nets(nets, obs_dim, act_dim):
    """Stack + zero-pad per-net params into lane-dense [N, ...] slabs."""
    cols = [[] for _ in range(7)]  # w1o, w1a, b1, w2, b2, w3, b3
    for (w1, b1, w2, b2, w3, b3) in nets:
        hidden = w1.shape[1]
        assert hidden <= LANE and obs_dim <= LANE and act_dim <= LANE
        if w1.shape[0] == obs_dim + act_dim:        # Q-net: concat(obs, act) input
            w1o, w1a = w1[:obs_dim], w1[obs_dim:]
        else:                                        # V-net: obs-only input
            w1o = w1
            w1a = jnp.zeros((act_dim, hidden), w1.dtype)
        parts = (
            _pad_to(w1o, LANE, LANE), _pad_to(w1a, LANE, LANE), _pad_to(b1, 1, LANE),
            _pad_to(w2, LANE, LANE), _pad_to(b2, 1, LANE),
            _pad_to(w3, LANE, LANE), _pad_to(b3, 1, LANE),
        )
        for acc, p in zip(cols, parts):
            acc.append(p)
    return tuple(jnp.stack(c, axis=0) for c in cols)


def init_critic_slac_params(key, obs_dim, action_dim, hidden):
    ks = jax.random.split(key, 5)
    raw = {
        "qf1": _init_mlp_params(ks[0], obs_dim + action_dim, hidden),
        "qf2": _init_mlp_params(ks[1], obs_dim + action_dim, hidden),
        "target_qf1": _init_mlp_params(ks[2], obs_dim + action_dim, hidden),
        "target_qf2": _init_mlp_params(ks[3], obs_dim + action_dim, hidden),
        "vf": _init_mlp_params(ks[4], obs_dim, hidden),
    }
    packed_all = _pack_nets(
        [raw["qf1"], raw["qf2"], raw["target_qf1"], raw["target_qf2"], raw["vf"]],
        obs_dim, action_dim)
    packed_vf = _pack_nets([raw["vf"]], obs_dim, action_dim)
    return {"raw": raw, "packed_all": packed_all, "packed_vf": packed_vf}


# ----------------------------------------------------------------------------
# CriticSLAC.forward
# ----------------------------------------------------------------------------
def _pad_batch_features(x, b_pad):
    b, d = x.shape
    out = jnp.zeros((b_pad, LANE), x.dtype)
    return out.at[:b, :d].set(x)


def critic_slac_forward(params, obs_encoded, action=None):
    b = obs_encoded.shape[0]
    b_pad = max(SUBLANE, ((b + SUBLANE - 1) // SUBLANE) * SUBLANE)
    obs_p = _pad_batch_features(obs_encoded, b_pad)

    if action is None:
        act_p = jnp.zeros((b_pad, LANE), obs_encoded.dtype)
        out = fused_critic_mlps(obs_p, act_p, params["packed_vf"])
        return out[0, :b, 0:1]

    act_p = _pad_batch_features(action, b_pad)
    out = fused_critic_mlps(obs_p, act_p, params["packed_all"])
    q1 = out[0, :b, 0:1]
    q2 = out[1, :b, 0:1]
    target_q1 = out[2, :b, 0:1]
    target_q2 = out[3, :b, 0:1]
    vf = out[4, :b, 0:1]
    return (q1, q2, target_q1, target_q2, vf)


# ----------------------------------------------------------------------------
# Pure-JAX reference for verification
# ----------------------------------------------------------------------------
def _mlp3_ref(x, params):
    w1, b1, w2, b2, w3, b3 = params
    h1 = jnp.maximum(x @ w1 + b1, 0.0)
    h2 = jnp.maximum(h1 @ w2 + b2, 0.0)
    return h2 @ w3 + b3


def _critic_slac_ref(raw, obs, action):
    oa = jnp.concatenate([obs, action], axis=-1)
    return (
        _mlp3_ref(oa, raw["qf1"]),
        _mlp3_ref(oa, raw["qf2"]),
        _mlp3_ref(oa, raw["target_qf1"]),
        _mlp3_ref(oa, raw["target_qf2"]),
        _mlp3_ref(obs, raw["vf"]),
    )


if __name__ == "__main__":
    B, OBS_DIM, ACT_DIM, HIDDEN = 8, 32, 8, 32

    key = jax.random.PRNGKey(0)
    k_obs, k_act, k_params = jax.random.split(key, 3)

    obs_encoded = jax.random.normal(k_obs, (B, OBS_DIM), jnp.float32)
    action = jax.random.normal(k_act, (B, ACT_DIM), jnp.float32)
    params = init_critic_slac_params(k_params, OBS_DIM, ACT_DIM, HIDDEN)

    fwd = jax.jit(critic_slac_forward)
    outs = jax.block_until_ready(fwd(params, obs_encoded, action))

    # Also exercise the action=None path (returns just vf).
    vf_only = jax.block_until_ready(critic_slac_forward(params, obs_encoded))

    refs = _critic_slac_ref(params["raw"], obs_encoded, action)
    for o, r in zip(outs, refs):
        np.testing.assert_allclose(np.asarray(o), np.asarray(r), rtol=1e-5, atol=1e-5)
    np.testing.assert_allclose(np.asarray(vf_only), np.asarray(refs[-1]),
                               rtol=1e-5, atol=1e-5)

    print("KERNEL_OK")
</pallas_src>

<mosaic_0001>
module attributes {stable_mosaic.version = 11 : i64} {
  func.func @_fused_mlp3_kernel(%arg0: i32, %arg1: memref<8x128xf32, #tpu.memory_space<vmem>>, %arg2: memref<8x128xf32, #tpu.memory_space<vmem>>, %arg3: memref<1x128x128xf32, #tpu.memory_space<vmem>>, %arg4: memref<1x128x128xf32, #tpu.memory_space<vmem>>, %arg5: memref<1x1x128xf32, #tpu.memory_space<vmem>>, %arg6: memref<1x128x128xf32, #tpu.memory_space<vmem>>, %arg7: memref<1x1x128xf32, #tpu.memory_space<vmem>>, %arg8: memref<1x128x128xf32, #tpu.memory_space<vmem>>, %arg9: memref<1x1x128xf32, #tpu.memory_space<vmem>>, %arg10: memref<1x8x128xf32, #tpu.memory_space<vmem>>) attributes {dimension_semantics = [#tpu.dimension_semantics<parallel>], iteration_bounds = array<i64: 5>, scalar_prefetch = 0 : i64, scratch_operands = 0 : i64, tpu.core_type = #tpu.core_type<tc>, window_params = [{pipeline_mode = #tpu.pipeline_mode<synchronous>, transform_indices = @transform_0, window_bounds = array<i64: 8, 128>}, {pipeline_mode = #tpu.pipeline_mode<synchronous>, transform_indices = @transform_1, window_bounds = array<i64: 8, 128>}, {transform_indices = @transform_2, window_bounds = array<i64: 1, 128, 128>}, {transform_indices = @transform_3, window_bounds = array<i64: 1, 128, 128>}, {transform_indices = @transform_4, window_bounds = array<i64: 1, 1, 128>}, {transform_indices = @transform_5, window_bounds = array<i64: 1, 128, 128>}, {transform_indices = @transform_6, window_bounds = array<i64: 1, 1, 128>}, {transform_indices = @transform_7, window_bounds = array<i64: 1, 128, 128>}, {transform_indices = @transform_8, window_bounds = array<i64: 1, 1, 128>}, {transform_indices = @transform_9, window_bounds = array<i64: 1, 8, 128>}]} {
    %c0 = arith.constant 0 : index
    %c0_0 = arith.constant 0 : index
    %0 = vector.load %arg1[%c0, %c0_0] : memref<8x128xf32, #tpu.memory_space<vmem>>, vector<8x128xf32>
    %c0_1 = arith.constant 0 : index
    %c0_2 = arith.constant 0 : index
    %c0_3 = arith.constant 0 : index
    %1 = vector.load %arg3[%c0_1, %c0_2, %c0_3] : memref<1x128x128xf32, #tpu.memory_space<vmem>>, vector<1x128x128xf32>
    %2 = vector.shape_cast %1 : vector<1x128x128xf32> to vector<128x128xf32>
    %cst = arith.constant dense<0.000000e+00> : vector<8x128xf32>
    %3 = tpu.matmul %0, %2, %cst {dimension_numbers = #tpu.dot_dimension_numbers<[1], [0], [0], [1], [0, 0, 1, 1], [], []>} : vector<8x128xf32>, vector<128x128xf32>, vector<8x128xf32> -> vector<8x128xf32>
    %c0_4 = arith.constant 0 : index
    %c0_5 = arith.constant 0 : index
    %4 = vector.load %arg2[%c0_4, %c0_5] : memref<8x128xf32, #tpu.memory_space<vmem>>, vector<8x128xf32>
    %c0_6 = arith.constant 0 : index
    %c0_7 = arith.constant 0 : index
    %c0_8 = arith.constant 0 : index
    %5 = vector.load %arg4[%c0_6, %c0_7, %c0_8] : memref<1x128x128xf32, #tpu.memory_space<vmem>>, vector<1x128x128xf32>
    %6 = vector.shape_cast %5 : vector<1x128x128xf32> to vector<128x128xf32>
    %cst_9 = arith.constant dense<0.000000e+00> : vector<8x128xf32>
    %7 = tpu.matmul %4, %6, %cst_9 {dimension_numbers = #tpu.dot_dimension_numbers<[1], [0], [0], [1], [0, 0, 1, 1], [], []>} : vector<8x128xf32>, vector<128x128xf32>, vector<8x128xf32> -> vector<8x128xf32>
    %8 = arith.addf %3, %7 : vector<8x128xf32>
    %c0_10 = arith.constant 0 : index
    %c0_11 = arith.constant 0 : index
    %c0_12 = arith.constant 0 : index
    %9 = vector.load %arg5[%c0_10, %c0_11, %c0_12] : memref<1x1x128xf32, #tpu.memory_space<vmem>>, vector<1x1x128xf32>
    %10 = vector.shape_cast %9 : vector<1x1x128xf32> to vector<1x128xf32>
    %11 = vector.broadcast %10 : vector<1x128xf32> to vector<8x128xf32>
    %12 = arith.addf %8, %11 : vector<8x128xf32>
    %cst_13 = arith.constant 0.000000e+00 : f32
    %13 = vector.broadcast %cst_13 : f32 to vector<8x128xf32>
    %14 = arith.maximumf %12, %13 : vector<8x128xf32>
    %c0_14 = arith.constant 0 : index
    %c0_15 = arith.constant 0 : index
    %c0_16 = arith.constant 0 : index
    %15 = vector.load %arg6[%c0_14, %c0_15, %c0_16] : memref<1x128x128xf32, #tpu.memory_space<vmem>>, vector<1x128x128xf32>
    %16 = vector.shape_cast %15 : vector<1x128x128xf32> to vector<128x128xf32>
    %cst_17 = arith.constant dense<0.000000e+00> : vector<8x128xf32>
    %17 = tpu.matmul %14, %16, %cst_17 {dimension_numbers = #tpu.dot_dimension_numbers<[1], [0], [0], [1], [0, 0, 1, 1], [], []>} : vector<8x128xf32>, vector<128x128xf32>, vector<8x128xf32> -> vector<8x128xf32>
    %c0_18 = arith.constant 0 : index
    %c0_19 = arith.constant 0 : index
    %c0_20 = arith.constant 0 : index
    %18 = vector.load %arg7[%c0_18, %c0_19, %c0_20] : memref<1x1x128xf32, #tpu.memory_space<vmem>>, vector<1x1x128xf32>
    %19 = vector.shape_cast %18 : vector<1x1x128xf32> to vector<1x128xf32>
    %20 = vector.broadcast %19 : vector<1x128xf32> to vector<8x128xf32>
    %21 = arith.addf %17, %20 : vector<8x128xf32>
    %cst_21 = arith.constant 0.000000e+00 : f32
    %22 = vector.broadcast %cst_21 : f32 to vector<8x128xf32>
    %23 = arith.maximumf %21, %22 : vector<8x128xf32>
    %c0_22 = arith.constant 0 : index
    %c0_23 = arith.constant 0 : index
    %c0_24 = arith.constant 0 : index
    %24 = vector.load %arg8[%c0_22, %c0_23, %c0_24] : memref<1x128x128xf32, #tpu.memory_space<vmem>>, vector<1x128x128xf32>
    %25 = vector.shape_cast %24 : vector<1x128x128xf32> to vector<128x128xf32>
    %cst_25 = arith.constant dense<0.000000e+00> : vector<8x128xf32>
    %26 = tpu.matmul %23, %25, %cst_25 {dimension_numbers = #tpu.dot_dimension_numbers<[1], [0], [0], [1], [0, 0, 1, 1], [], []>} : vector<8x128xf32>, vector<128x128xf32>, vector<8x128xf32> -> vector<8x128xf32>
    %c0_26 = arith.constant 0 : index
    %c0_27 = arith.constant 0 : index
    %c0_28 = arith.constant 0 : index
    %27 = vector.load %arg9[%c0_26, %c0_27, %c0_28] : memref<1x1x128xf32, #tpu.memory_space<vmem>>, vector<1x1x128xf32>
    %28 = vector.shape_cast %27 : vector<1x1x128xf32> to vector<1x128xf32>
    %29 = vector.broadcast %28 : vector<1x128xf32> to vector<8x128xf32>
    %30 = arith.addf %26, %29 : vector<8x128xf32>
    %c0_29 = arith.constant 0 : index
    %c0_30 = arith.constant 0 : index
    %c0_31 = arith.constant 0 : index
    %31 = vector.load %arg10[%c0_29, %c0_30, %c0_31] : memref<1x8x128xf32, #tpu.memory_space<vmem>>, vector<1x8x128xf32>
    %32 = vector.shape_cast %31 : vector<1x8x128xf32> to vector<8x128xf32>
    %33 = vector.shape_cast %30 : vector<8x128xf32> to vector<1x8x128xf32>
    tpu.vector_store %arg10[%c0_29, %c0_30, %c0_31], %33 {strides = array<i32>} : memref<1x8x128xf32, #tpu.memory_space<vmem>>, vector<1x8x128xf32>,
    return
  }
  func.func @transform_0(%arg0: i32) -> (i32, i32) {
    %c0_i32 = arith.constant 0 : i32
    %c0_i32_0 = arith.constant 0 : i32
    %c0_i32_1 = arith.constant 0 : i32
    return %c0_i32, %c0_i32_0 : i32, i32
  }
  func.func @transform_1(%arg0: i32) -> (i32, i32) {
    %c0_i32 = arith.constant 0 : i32
    %c0_i32_0 = arith.constant 0 : i32
    %c0_i32_1 = arith.constant 0 : i32
    return %c0_i32, %c0_i32_0 : i32, i32
  }
  func.func @transform_2(%arg0: i32) -> (i32, i32, i32) {
    %c0_i32 = arith.constant 0 : i32
    %c0_i32_0 = arith.constant 0 : i32
    %c0_i32_1 = arith.constant 0 : i32
    return %arg0, %c0_i32, %c0_i32_0 : i32, i32, i32
  }
  func.func @transform_3(%arg0: i32) -> (i32, i32, i32) {
    %c0_i32 = arith.constant 0 : i32
    %c0_i32_0 = arith.constant 0 : i32
    %c0_i32_1 = arith.constant 0 : i32
    return %arg0, %c0_i32, %c0_i32_0 : i32, i32, i32
  }
  func.func @transform_4(%arg0: i32) -> (i32, i32, i32) {
    %c0_i32 = arith.constant 0 : i32
    %c0_i32_0 = arith.constant 0 : i32
    %c0_i32_1 = arith.constant 0 : i32
    return %arg0, %c0_i32, %c0_i32_0 : i32, i32, i32
  }
  func.func @transform_5(%arg0: i32) -> (i32, i32, i32) {
    %c0_i32 = arith.constant 0 : i32
    %c0_i32_0 = arith.constant 0 : i32
    %c0_i32_1 = arith.constant 0 : i32
    return %arg0, %c0_i32, %c0_i32_0 : i32, i32, i32
  }
  func.func @transform_6(%arg0: i32) -> (i32, i32, i32) {
    %c0_i32 = arith.constant 0 : i32
    %c0_i32_0 = arith.constant 0 : i32
    %c0_i32_1 = arith.constant 0 : i32
    return %arg0, %c0_i32, %c0_i32_0 : i32, i32, i32
  }
  func.func @transform_7(%arg0: i32) -> (i32, i32, i32) {
    %c0_i32 = arith.constant 0 : i32
    %c0_i32_0 = arith.constant 0 : i32
    %c0_i32_1 = arith.constant 0 : i32
    return %arg0, %c0_i32, %c0_i32_0 : i32, i32, i32
  }
  func.func @transform_8(%arg0: i32) -> (i32, i32, i32) {
    %c0_i32 = arith.constant 0 : i32
    %c0_i32_0 = arith.constant 0 : i32
    %c0_i32_1 = arith.constant 0 : i32
    return %arg0, %c0_i32, %c0_i32_0 : i32, i32, i32
  }
  func.func @transform_9(%arg0: i32) -> (i32, i32, i32) {
    %c0_i32 = arith.constant 0 : i32
    %c0_i32_0 = arith.constant 0 : i32
    %c0_i32_1 = arith.constant 0 : i32
    return %arg0, %c0_i32, %c0_i32_0 : i32, i32, i32
  }
}

</mosaic_0001>

<llo_original>
// kernel: critic_slac_forward.1
$region0: #{critic_slac_forward.1}
  #allocation0 [shape = 'u32[]', space=smem, size = 0x4, offset = 0x4, fixed_abs, tag = 'smem constant byte address 0x4 - core index']
  #allocation1 [shape = 'u32[144,128]{1,0:T(1,128)}', space=vmem, size = 0x12000, scoped, tag = 'internal scratch']
  %s0 = inlined_call_operand.vmem [shape: f32[8,128], index: 0, kind: input, shape index: {}]
  %s1 = inlined_call_operand.vmem [shape: f32[8,128], index: 1, kind: input, shape index: {}]
  %s2 = inlined_call_operand.hbm [shape: f32[5,128,128], index: 2, kind: input, shape index: {}]
  %s3 = inlined_call_operand.hbm [shape: f32[5,128,128], index: 3, kind: input, shape index: {}]
  %s4 = inlined_call_operand.vmem [shape: f32[5,1,128], index: 4, kind: input, shape index: {}]
  %s5 = inlined_call_operand.hbm [shape: f32[5,128,128], index: 5, kind: input, shape index: {}]
  %s6 = inlined_call_operand.vmem [shape: f32[5,1,128], index: 6, kind: input, shape index: {}]
  %s7 = inlined_call_operand.hbm [shape: f32[5,128,128], index: 7, kind: input, shape index: {}]
  %s8 = inlined_call_operand.vmem [shape: f32[5,1,128], index: 8, kind: input, shape index: {}]
  %s9 = inlined_call_operand.vmem [shape: f32[5,8,128], index: 9, kind: output, shape index: {}]
  %s10 = sld [smem:[#allocation0]]
  $region85: #{critic_slac_forward.1} parent=0
    _
  %s12 = ssub.s32 1, %s10
  %s13 = scalar_select 0, %s12, %s10
  $region1: #{critic_slac_forward.1} parent=0
    #allocation2 [shape = 'u8[131072]{0}', space=vmem, size = 0x20000, scoped, tag = 'input window, operand 2']
    #allocation3 [shape = 's32[2]{0}', space=sflag, size = 0x8, scoped, tag = 'scoped memory for critic_slac_forward.1']
    #allocation4 [shape = 'u8[131072]{0}', space=vmem, size = 0x20000, scoped, tag = 'input window, operand 3']
    #allocation5 [shape = 's32[2]{0}', space=sflag, size = 0x8, scoped, tag = 'scoped memory for critic_slac_forward.1']
    #allocation6 [shape = 'u8[131072]{0}', space=vmem, size = 0x20000, scoped, tag = 'input window, operand 5']
    #allocation7 [shape = 'u8[131072]{0}', space=vmem, size = 0x20000, scoped, tag = 'input window, operand 7']
    #allocation8 [shape = 's32[2]{0}', space=sflag, size = 0x8, scoped, tag = 'scoped memory for critic_slac_forward.1']
    %14 = vsyncpa [#allocation3], 0
    %s15 = scalar_lea.sflag [#allocation3], 1
    %16 = vsyncpa %s15, 0
    %17 = vsyncpa [#allocation5], 0
    %s18 = scalar_lea.sflag [#allocation5], 1
    %19 = vsyncpa %s18, 0
    %20 = vsyncpa [#allocation8], 0
    %s21 = scalar_lea.sflag [#allocation8], 1
    %22 = vsyncpa %s21, 0
    loop: start=0, step=1, limit=7
    $region2: #{critic_slac_forward.1} parent=1 // loop_pre_header
      _
    $region3: #{critic_slac_forward.1} parent=1 // loop_header
      %s24 = sphi 0, %s28
      %p25 = scmp.ge.s32.totalorder %s24, 7
      %s32 = sphi 0, %s32
      %s34 = sphi 0, %s32
      %s35 = sphi 0, %s34
      %s49 = sphi 0, %s35
      %s53 = sphi 0, %s53
      %s55 = sphi 0, %s53
      %s56 = sphi 0, %s55
      %s70 = sphi 0, %s56
      %s76 = sphi 0, %s78
      %s79 = sphi 0, %s76
      %s80 = sphi 0, %s79
      %s96 = sphi 0, %s80
      %s102 = sphi 0, %s104
      %s105 = sphi 0, %s102
      %s106 = sphi 0, %s105
      %s122 = sphi 0, %s106
      %s128 = sphi 0, %s130
      %s131 = sphi 0, %s128
      %s132 = sphi 0, %s131
      %s148 = sphi 0, %s132
      %s154 = sphi 0, %s156
      %s157 = sphi 0, %s154
      %s158 = sphi 0, %s157
      %s174 = sphi 0, %s158
      %s180 = sphi 0, %s182
      %s183 = sphi 0, %s180
      %s184 = sphi 0, %s183
      %s200 = sphi 0, %s184
      %s206 = sphi 0, %s208
      %s209 = sphi 0, %s206
      %s210 = sphi 0, %s209
      %s226 = sphi 0, %s210
      %s232 = sphi 0, %s234
      %s235 = sphi 0, %s232
      %s236 = sphi 0, %s235
      %s252 = sphi 0, %s236
      %s258 = sphi 0, %s260
      %s261 = sphi 0, %s258
      %s262 = sphi 0, %s261
      %s278 = sphi 0, %s262
    $region4: #{critic_slac_forward.1} parent=1 // loop_header_branch
      %27 = sbr.rel (%p25) target = $region8
    $region5: #{critic_slac_forward.1} parent=1 // loop_body
      %s29 = ssub.s32 %s24, 1
      %s30 = ssub.s32 %s24, 2
      %s31 = sadd.s32 %s24, 1
      %s33 = sadd.s32 %s32, 1
      %p36 = scmp.eq.s32.totalorder %s24, 4
      %p37 = scmp.ne.s32.totalorder %s32, %s34
      %p38 = scmp.eq.s32.totalorder %s24, 0
      %p39 = por %p37, %p38
      %p40 = scmp.ne.s32.totalorder %s32, %s34
      %p41 = scmp.eq.s32.totalorder %s29, 4
      %p42 = por %p40, %p41
      %p43 = scmp.ne.s32.totalorder %s34, %s35
      %p44 = scmp.eq.s32.totalorder %s29, 0
      %p45 = por %p43, %p44
      %p46 = scmp.ne.s32.totalorder %s34, %s35
      %p47 = scmp.eq.s32.totalorder %s30, 4
      %p48 = por %p46, %p47
      %p50 = scmp.ne.s32.totalorder %s35, %s49
      %p51 = scmp.eq.s32.totalorder %s30, 0
      %p52 = por %p50, %p51
      %s54 = sadd.s32 %s53, 1
      %p57 = scmp.eq.s32.totalorder %s24, 4
      %p58 = scmp.ne.s32.totalorder %s53, %s55
      %p59 = scmp.eq.s32.totalorder %s24, 0
      %p60 = por %p58, %p59
      %p61 = scmp.ne.s32.totalorder %s53, %s55
      %p62 = scmp.eq.s32.totalorder %s29, 4
      %p63 = por %p61, %p62
      %p64 = scmp.ne.s32.totalorder %s55, %s56
      %p65 = scmp.eq.s32.totalorder %s29, 0
      %p66 = por %p64, %p65
      %p67 = scmp.ne.s32.totalorder %s55, %s56
      %p68 = scmp.eq.s32.totalorder %s30, 4
      %p69 = por %p67, %p68
      %p71 = scmp.ne.s32.totalorder %s56, %s70
      %p72 = scmp.eq.s32.totalorder %s30, 0
      %p73 = por %p71, %p72
      %s74 = ssub.s32 %s24, %s31
      %p75 = scmp.eq.s32.totalorder %s74, 0
      %s77 = sadd.s32 %s76, 1
      %s78 = scalar_select %p75, %s76, %s77
      %p81 = pneg %p75
      %p82 = scmp.eq.s32.totalorder %s24, 4
      %p83 = por %p81, %p82
      %p84 = scmp.ne.s32.totalorder %s76, %s79
      %p85 = scmp.eq.s32.totalorder %s24, 0
      %p86 = por %p84, %p85
      %p87 = scmp.ne.s32.totalorder %s76, %s79
      %p88 = scmp.eq.s32.totalorder %s29, 4
      %p89 = por %p87, %p88
      %p90 = scmp.ne.s32.totalorder %s79, %s80
      %p91 = scmp.eq.s32.totalorder %s29, 0
      %p92 = por %p90, %p91
      %p93 = scmp.ne.s32.totalorder %s79, %s80
      %p94 = scmp.eq.s32.totalorder %s30, 4
      %p95 = por %p93, %p94
      %p97 = scmp.ne.s32.totalorder %s80, %s96
      %p98 = scmp.eq.s32.totalorder %s30, 0
      %p99 = por %p97, %p98
      %s100 = ssub.s32 %s24, %s31
      %p101 = scmp.eq.s32.totalorder %s100, 0
      %s103 = sadd.s32 %s102, 1
      %s104 = scalar_select %p101, %s102, %s103
      %p107 = pneg %p101
      %p108 = scmp.eq.s32.totalorder %s24, 4
      %p109 = por %p107, %p108
      %p110 = scmp.ne.s32.totalorder %s102, %s105
      %p111 = scmp.eq.s32.totalorder %s24, 0
      %p112 = por %p110, %p111
      %p113 = scmp.ne.s32.totalorder %s102, %s105
      %p114 = scmp.eq.s32.totalorder %s29, 4
      %p115 = por %p113, %p114
      %p116 = scmp.ne.s32.totalorder %s105, %s106
      %p117 = scmp.eq.s32.totalorder %s29, 0
      %p118 = por %p116, %p117
      %p119 = scmp.ne.s32.totalorder %s105, %s106
      %p120 = scmp.eq.s32.totalorder %s30, 4
      %p121 = por %p119, %p120
      %p123 = scmp.ne.s32.totalorder %s106, %s122
      %p124 = scmp.eq.s32.totalorder %s30, 0
      %p125 = por %p123, %p124
      %s126 = ssub.s32 %s24, %s31
      %p127 = scmp.eq.s32.totalorder %s126, 0
      %s129 = sadd.s32 %s128, 1
      %s130 = scalar_select %p127, %s128, %s129
      %p133 = pneg %p127
      %p134 = scmp.eq.s32.totalorder %s24, 4
      %p135 = por %p133, %p134
      %p136 = scmp.ne.s32.totalorder %s128, %s131
      %p137 = scmp.eq.s32.totalorder %s24, 0
      %p138 = por %p136, %p137
      %p139 = scmp.ne.s32.totalorder %s128, %s131
      %p140 = scmp.eq.s32.totalorder %s29, 4
      %p141 = por %p139, %p140
      %p142 = scmp.ne.s32.totalorder %s131, %s132
      %p143 = scmp.eq.s32.totalorder %s29, 0
      %p144 = por %p142, %p143
      %p145 = scmp.ne.s32.totalorder %s131, %s132
      %p146 = scmp.eq.s32.totalorder %s30, 4
      %p147 = por %p145, %p146
      %p149 = scmp.ne.s32.totalorder %s132, %s148
      %p150 = scmp.eq.s32.totalorder %s30, 0
      %p151 = por %p149, %p150
      %s152 = ssub.s32 %s24, %s31
      %p153 = scmp.eq.s32.totalorder %s152, 0
      %s155 = sadd.s32 %s154, 1
      %s156 = scalar_select %p153, %s154, %s155
      %p159 = pneg %p153
      %p160 = scmp.eq.s32.totalorder %s24, 4
      %p161 = por %p159, %p160
      %p162 = scmp.ne.s32.totalorder %s154, %s157
      %p163 = scmp.eq.s32.totalorder %s24, 0
      %p164 = por %p162, %p163
      %p165 = scmp.ne.s32.totalorder %s154, %s157
      %p166 = scmp.eq.s32.totalorder %s29, 4
      %p167 = por %p165, %p166
      %p168 = scmp.ne.s32.totalorder %s157, %s158
      %p169 = scmp.eq.s32.totalorder %s29, 0
      %p170 = por %p168, %p169
      %p171 = scmp.ne.s32.totalorder %s157, %s158
      %p172 = scmp.eq.s32.totalorder %s30, 4
      %p173 = por %p171, %p172
      %p175 = scmp.ne.s32.totalorder %s158, %s174
      %p176 = scmp.eq.s32.totalorder %s30, 0
      %p177 = por %p175, %p176
      %s178 = ssub.s32 %s24, %s31
      %p179 = scmp.eq.s32.totalorder %s178, 0
      %s181 = sadd.s32 %s180, 1
      %s182 = scalar_select %p179, %s180, %s181
      %p185 = pneg %p179
      %p186 = scmp.eq.s32.totalorder %s24, 4
      %p187 = por %p185, %p186
      %p188 = scmp.ne.s32.totalorder %s180, %s183
      %p189 = scmp.eq.s32.totalorder %s24, 0
      %p190 = por %p188, %p189
      %p191 = scmp.ne.s32.totalorder %s180, %s183
      %p192 = scmp.eq.s32.totalorder %s29, 4
      %p193 = por %p191, %p192
      %p194 = scmp.ne.s32.totalorder %s183, %s184
      %p195 = scmp.eq.s32.totalorder %s29, 0
      %p196 = por %p194, %p195
      %p197 = scmp.ne.s32.totalorder %s183, %s184
      %p198 = scmp.eq.s32.totalorder %s30, 4
      %p199 = por %p197, %p198
      %p201 = scmp.ne.s32.totalorder %s184, %s200
      %p202 = scmp.eq.s32.totalorder %s30, 0
      %p203 = por %p201, %p202
      %s204 = ssub.s32 %s24, %s31
      %p205 = scmp.eq.s32.totalorder %s204, 0
      %s207 = sadd.s32 %s206, 1
      %s208 = scalar_select %p205, %s206, %s207
      %p211 = pneg %p205
      %p212 = scmp.eq.s32.totalorder %s24, 4
      %p213 = por %p211, %p212
      %p214 = scmp.ne.s32.totalorder %s206, %s209
      %p215 = scmp.eq.s32.totalorder %s24, 0
      %p216 = por %p214, %p215
      %p217 = scmp.ne.s32.totalorder %s206, %s209
      %p218 = scmp.eq.s32.totalorder %s29, 4
      %p219 = por %p217, %p218
      %p220 = scmp.ne.s32.totalorder %s209, %s210
      %p221 = scmp.eq.s32.totalorder %s29, 0
      %p222 = por %p220, %p221
      %p223 = scmp.ne.s32.totalorder %s209, %s210
      %p224 = scmp.eq.s32.totalorder %s30, 4
      %p225 = por %p223, %p224
      %p227 = scmp.ne.s32.totalorder %s210, %s226
      %p228 = scmp.eq.s32.totalorder %s30, 0
      %p229 = por %p227, %p228
      %s230 = ssub.s32 %s24, %s31
      %p231 = scmp.eq.s32.totalorder %s230, 0
      %s233 = sadd.s32 %s232, 1
      %s234 = scalar_select %p231, %s232, %s233
      %p237 = pneg %p231
      %p238 = scmp.eq.s32.totalorder %s24, 4
      %p239 = por %p237, %p238
      %p240 = scmp.ne.s32.totalorder %s232, %s235
      %p241 = scmp.eq.s32.totalorder %s24, 0
      %p242 = por %p240, %p241
      %p243 = scmp.ne.s32.totalorder %s232, %s235
      %p244 = scmp.eq.s32.totalorder %s29, 4
      %p245 = por %p243, %p244
      %p246 = scmp.ne.s32.totalorder %s235, %s236
      %p247 = scmp.eq.s32.totalorder %s29, 0
      %p248 = por %p246, %p247
      %p249 = scmp.ne.s32.totalorder %s235, %s236
      %p250 = scmp.eq.s32.totalorder %s30, 4
      %p251 = por %p249, %p250
      %p253 = scmp.ne.s32.totalorder %s236, %s252
      %p254 = scmp.eq.s32.totalorder %s30, 0
      %p255 = por %p253, %p254
      %s256 = ssub.s32 %s24, %s31
      %p257 = scmp.eq.s32.totalorder %s256, 0
      %s259 = sadd.s32 %s258, 1
      %s260 = scalar_select %p257, %s258, %s259
      %p263 = pneg %p257
      %p264 = scmp.eq.s32.totalorder %s24, 4
      %p265 = por %p263, %p264
      %p266 = scmp.ne.s32.totalorder %s258, %s261
      %p267 = scmp.eq.s32.totalorder %s24, 0
      %p268 = por %p266, %p267
      %p269 = scmp.ne.s32.totalorder %s258, %s261
      %p270 = scmp.eq.s32.totalorder %s29, 4
      %p271 = por %p269, %p270
      %p272 = scmp.ne.s32.totalorder %s261, %s262
      %p273 = scmp.eq.s32.totalorder %s29, 0
      %p274 = por %p272, %p273
      %p275 = scmp.ne.s32.totalorder %s261, %s262
      %p276 = scmp.eq.s32.totalorder %s30, 4
      %p277 = por %p275, %p276
      %p279 = scmp.ne.s32.totalorder %s262, %s278
      %p280 = scmp.eq.s32.totalorder %s30, 0
      %p281 = por %p279, %p280
      %p282 = scmp.le.s32.totalorder 1, %s24
      %p283 = scmp.lt.s32.totalorder %s24, 6
      %p284 = pnand %p282, %p283
      %p285 = pneg %p284
      // Predicated region
      $region9: #{critic_slac_forward.1} parent=5 // pred_check
        _
      $region10: #{critic_slac_forward.1} parent=5 // pred_check_branch
        %287 = sbr.rel (%p284) target = $region12
      $region11: #{critic_slac_forward.1} parent=5 // pred_region
        %s288 = ssub.s32 %s24, 1
        // Predicated region
        $region13: #{critic_slac_forward.1} parent=11 // pred_check
          %p289 = pneg %p45
        $region14: #{critic_slac_forward.1} parent=11 // pred_check_branch
          %291 = sbr.rel (%p289) target = $region16
        $region15: #{critic_slac_forward.1} parent=11 // pred_region
          _
        $region16: #{critic_slac_forward.1} parent=11 // pred_fallthru
          _
        // Predicated region
        $region17: #{critic_slac_forward.1} parent=11 // pred_check
          %p292 = pneg %p66
        $region18: #{critic_slac_forward.1} parent=11 // pred_check_branch
          %294 = sbr.rel (%p292) target = $region20
        $region19: #{critic_slac_forward.1} parent=11 // pred_region
          _
        $region20: #{critic_slac_forward.1} parent=11 // pred_fallthru
          _
      $region12: #{critic_slac_forward.1} parent=5 // pred_fallthru
        _
      %p295 = scmp.lt.s32.totalorder %s24, 5
      // Predicated region
      $region21: #{critic_slac_forward.1} parent=5 // pred_check
        %p296 = pneg %p295
      $region22: #{critic_slac_forward.1} parent=5 // pred_check_branch
        %298 = sbr.rel (%p296) target = $region24
      $region23: #{critic_slac_forward.1} parent=5 // pred_region
        // Predicated region
        $region25: #{critic_slac_forward.1} parent=23 // pred_check
          %p299 = pneg %p86
        $region26: #{critic_slac_forward.1} parent=23 // pred_check_branch
          %301 = sbr.rel (%p299) target = $region28
        $region27: #{critic_slac_forward.1} parent=23 // pred_region
          %s302 = sand.u32 %s76, 1
          %s303 = scalar_lea.sflag [#allocation3], %s302
          %s304 = sand.u32 %s76, 1
          %s305 = smul.addr %s304, 128
          %s306 = scalar_lea.vmem [#allocation2], %s305
          %s308 = ssub.s32 2048, 2048
          %309 = vsyncadd %s303, %s308
          %s310 = smul.addr %s24, 16
          %s311 = smul.addr %s310, 128
          %s312 = scalar_lea.hbm %s2, %s311
          %s313 = sshll.u32 %s306, 4
          %s314 = int_to_ptr.vmem [resolvable:$true] %s313
          %319 = dma.hbm_to_vmem [thread:$0]  %s312, 2048, %s314, %s303, 128, 128, 8
        $region28: #{critic_slac_forward.1} parent=23 // pred_fallthru
          _
        // Predicated region
        $region29: #{critic_slac_forward.1} parent=23 // pred_check
          %p320 = pneg %p112
        $region30: #{critic_slac_forward.1} parent=23 // pred_check_branch
          %322 = sbr.rel (%p320) target = $region32
        $region31: #{critic_slac_forward.1} parent=23 // pred_region
          %s323 = sand.u32 %s24, 1
          %s324 = scalar_lea.sflag [#allocation5], %s323
          %s325 = sand.u32 %s102, 1
          %s326 = smul.addr %s325, 128
          %s327 = scalar_lea.vmem [#allocation4], %s326
          %s329 = ssub.s32 2048, 2048
          %330 = vsyncadd %s324, %s329
          %s331 = smul.addr %s24, 16
          %s332 = smul.addr %s331, 128
          %s333 = scalar_lea.hbm %s3, %s332
          %s334 = sshll.u32 %s327, 4
          %s335 = int_to_ptr.vmem [resolvable:$true] %s334
          %340 = dma.hbm_to_vmem [thread:$0]  %s333, 2048, %s335, %s324, 128, 128, 8
        $region32: #{critic_slac_forward.1} parent=23 // pred_fallthru
          _
        // Predicated region
        $region33: #{critic_slac_forward.1} parent=23 // pred_check
          %p341 = pneg %p138
        $region34: #{critic_slac_forward.1} parent=23 // pred_check_branch
          %343 = sbr.rel (%p341) target = $region36
        $region35: #{critic_slac_forward.1} parent=23 // pred_region
          %p344 = scmp.lt.s32.totalorder %s24, 4
          %s345 = scalar_select %p344, %s24, 4
          %s346 = scalar_lea.vmem %s4, %s345
        $region36: #{critic_slac_forward.1} parent=23 // pred_fallthru
          _
        // Predicated region
        $region37: #{critic_slac_forward.1} parent=23 // pred_check
          %p347 = pneg %p164
        $region38: #{critic_slac_forward.1} parent=23 // pred_check_branch
          %349 = sbr.rel (%p347) target = $region40
        $region39: #{critic_slac_forward.1} parent=23 // pred_region
          %s350 = sand.u32 %s24, 1
          %s351 = scalar_lea.sflag [#allocation5], %s350
          %s352 = sand.u32 %s154, 1
          %s353 = smul.addr %s352, 128
          %s354 = scalar_lea.vmem [#allocation6], %s353
          %s356 = ssub.s32 2048, 2048
          %357 = vsyncadd %s351, %s356
          %s358 = smul.addr %s24, 16
          %s359 = smul.addr %s358, 128
          %s360 = scalar_lea.hbm %s5, %s359
          %s361 = sshll.u32 %s354, 4
          %s362 = int_to_ptr.vmem [resolvable:$true] %s361
          %367 = dma.hbm_to_vmem [thread:$0]  %s360, 2048, %s362, %s351, 128, 128, 8
        $region40: #{critic_slac_forward.1} parent=23 // pred_fallthru
          _
        // Predicated region
        $region41: #{critic_slac_forward.1} parent=23 // pred_check
          %p368 = pneg %p190
        $region42: #{critic_slac_forward.1} parent=23 // pred_check_branch
          %370 = sbr.rel (%p368) target = $region44
        $region43: #{critic_slac_forward.1} parent=23 // pred_region
          %p371 = scmp.lt.s32.totalorder %s24, 4
          %s372 = scalar_select %p371, %s24, 4
          %s373 = scalar_lea.vmem %s6, %s372
        $region44: #{critic_slac_forward.1} parent=23 // pred_fallthru
          _
        // Predicated region
        $region45: #{critic_slac_forward.1} parent=23 // pred_check
          %p374 = pneg %p216
        $region46: #{critic_slac_forward.1} parent=23 // pred_check_branch
          %376 = sbr.rel (%p374) target = $region48
        $region47: #{critic_slac_forward.1} parent=23 // pred_region
          %s377 = sand.u32 %s206, 1
          %s378 = scalar_lea.sflag [#allocation8], %s377
          %s379 = sand.u32 %s206, 1
          %s380 = smul.addr %s379, 128
          %s381 = scalar_lea.vmem [#allocation7], %s380
          %s383 = ssub.s32 2048, 2048
          %384 = vsyncadd %s378, %s383
          %s385 = smul.addr %s24, 16
          %s386 = smul.addr %s385, 128
          %s387 = scalar_lea.hbm %s7, %s386
          %s388 = sshll.u32 %s381, 4
          %s389 = int_to_ptr.vmem [resolvable:$true] %s388
          %394 = dma.hbm_to_vmem [thread:$0]  %s387, 2048, %s389, %s378, 128, 128, 8
        $region48: #{critic_slac_forward.1} parent=23 // pred_fallthru
          _
        // Predicated region
        $region49: #{critic_slac_forward.1} parent=23 // pred_check
          %p395 = pneg %p242
        $region50: #{critic_slac_forward.1} parent=23 // pred_check_branch
          %397 = sbr.rel (%p395) target = $region52
        $region51: #{critic_slac_forward.1} parent=23 // pred_region
          %p398 = scmp.lt.s32.totalorder %s24, 4
          %s399 = scalar_select %p398, %s24, 4
          %s400 = scalar_lea.vmem %s8, %s399
        $region52: #{critic_slac_forward.1} parent=23 // pred_fallthru
          _
      $region24: #{critic_slac_forward.1} parent=5 // pred_fallthru
        _
      %p401 = scmp.le.s32.totalorder 1, %s24
      %p402 = scmp.lt.s32.totalorder %s24, 6
      %p403 = pnand %p401, %p402
      %p404 = pneg %p403
      // Predicated region
      $region53: #{critic_slac_forward.1} parent=5 // pred_check
        _
      $region54: #{critic_slac_forward.1} parent=5 // pred_check_branch
        %406 = sbr.rel (%p403) target = $region56
      $region55: #{critic_slac_forward.1} parent=5 // pred_region
        %s407 = ssub.s32 %s24, 1
        %s408 = sand.u32 %s79, 1
        %s409 = scalar_lea.sflag [#allocation3], %s408
        %s410 = sand.u32 %s79, 1
        %s411 = smul.addr %s410, 128
        %s412 = scalar_lea.vmem [#allocation2], %s411
        // Predicated region
        $region57: #{critic_slac_forward.1} parent=55 // pred_check
          %p413 = pneg %p92
        $region58: #{critic_slac_forward.1} parent=55 // pred_check_branch
          %415 = sbr.rel (%p413) target = $region60
        $region59: #{critic_slac_forward.1} parent=55 // pred_region
          %416 = dma.done %s409, 2048
        $region60: #{critic_slac_forward.1} parent=55 // pred_fallthru
          _
        %s417 = sand.u32 %s29, 1
        %s418 = scalar_lea.sflag [#allocation5], %s417
        %s419 = sand.u32 %s105, 1
        %s420 = smul.addr %s419, 128
        %s421 = scalar_lea.vmem [#allocation4], %s420
        // Predicated region
        $region61: #{critic_slac_forward.1} parent=55 // pred_check
          %p422 = pneg %p118
        $region62: #{critic_slac_forward.1} parent=55 // pred_check_branch
          %424 = sbr.rel (%p422) target = $region64
        $region63: #{critic_slac_forward.1} parent=55 // pred_region
          %425 = dma.done %s418, 2048
        $region64: #{critic_slac_forward.1} parent=55 // pred_fallthru
          _
        %s426 = sand.u32 %s29, 1
        %s427 = scalar_lea.sflag [#allocation5], %s426
        %s428 = sand.u32 %s157, 1
        %s429 = smul.addr %s428, 128
        %s430 = scalar_lea.vmem [#allocation6], %s429
        // Predicated region
        $region65: #{critic_slac_forward.1} parent=55 // pred_check
          %p431 = pneg %p170
        $region66: #{critic_slac_forward.1} parent=55 // pred_check_branch
          %433 = sbr.rel (%p431) target = $region68
        $region67: #{critic_slac_forward.1} parent=55 // pred_region
          %434 = dma.done %s427, 2048
        $region68: #{critic_slac_forward.1} parent=55 // pred_fallthru
          _
        %s435 = sand.u32 %s209, 1
        %s436 = scalar_lea.sflag [#allocation8], %s435
        %s437 = sand.u32 %s209, 1
        %s438 = smul.addr %s437, 128
        %s439 = scalar_lea.vmem [#allocation7], %s438
        // Predicated region
        $region69: #{critic_slac_forward.1} parent=55 // pred_check
          %p440 = pneg %p222
        $region70: #{critic_slac_forward.1} parent=55 // pred_check_branch
          %442 = sbr.rel (%p440) target = $region72
        $region71: #{critic_slac_forward.1} parent=55 // pred_region
          %443 = dma.done %s436, 2048
        $region72: #{critic_slac_forward.1} parent=55 // pred_fallthru
          _
        %p444 = pneg %p45
        %p445 = pneg %p42
        %p446 = pneg %p66
        %p447 = pneg %p63
        %s448 = sand.u32 %s79, 1
        %s449 = scalar_lea.sflag [#allocation3], %s448
        %s450 = sand.u32 %s79, 1
        %s451 = smul.addr %s450, 128
        %s452 = scalar_lea.vmem [#allocation2], %s451
        %p453 = pneg %p92
        %p454 = pneg %p89
        %s455 = sand.u32 %s29, 1
        %s456 = scalar_lea.sflag [#allocation5], %s455
        %s457 = sand.u32 %s105, 1
        %s458 = smul.addr %s457, 128
        %s459 = scalar_lea.vmem [#allocation4], %s458
        %p460 = pneg %p118
        %p461 = pneg %p115
        %p462 = scmp.lt.s32.totalorder %s29, 4
        %s463 = scalar_select %p462, %s29, 4
        %s464 = scalar_lea.vmem %s4, %s463
        %p465 = pneg %p144
        %p466 = pneg %p141
        %s467 = sand.u32 %s29, 1
        %s468 = scalar_lea.sflag [#allocation5], %s467
        %s469 = sand.u32 %s157, 1
        %s470 = smul.addr %s469, 128
        %s471 = scalar_lea.vmem [#allocation6], %s470
        %p472 = pneg %p170
        %p473 = pneg %p167
        %p474 = scmp.lt.s32.totalorder %s29, 4
        %s475 = scalar_select %p474, %s29, 4
        %s476 = scalar_lea.vmem %s6, %s475
        %p477 = pneg %p196
        %p478 = pneg %p193
        %s479 = sand.u32 %s209, 1
        %s480 = scalar_lea.sflag [#allocation8], %s479
        %s481 = sand.u32 %s209, 1
        %s482 = smul.addr %s481, 128
        %s483 = scalar_lea.vmem [#allocation7], %s482
        %p484 = pneg %p222
        %p485 = pneg %p219
        %p486 = scmp.lt.s32.totalorder %s29, 4
        %s487 = scalar_select %p486, %s29, 4
        %s488 = scalar_lea.vmem %s8, %s487
        %p489 = pneg %p248
        %p490 = pneg %p245
        %p491 = pneg %p274
        %p492 = pneg %p271
        %p493 = scmp.lt.s32.totalorder %s29, 4
        %s494 = scalar_select %p493, %s29, 4
        %s495 = smul.addr %s494, 8
        %s496 = scalar_lea.vmem %s9, %s495
        %p497 = scmp.lt.s32.totalorder %s29, 4
        %s498 = scalar_select %p497, %s29, 4
        %s499 = scalar_lea.vmem %s4, %s498
        %p500 = scmp.lt.s32.totalorder %s29, 4
        %s501 = scalar_select %p500, %s29, 4
        %s502 = scalar_lea.vmem %s6, %s501
        %p503 = scmp.lt.s32.totalorder %s29, 4
        %s504 = scalar_select %p503, %s29, 4
        %s505 = scalar_lea.vmem %s8, %s504
        %p506 = scmp.lt.s32.totalorder %s29, 4
        %s507 = scalar_select %p506, %s29, 4
        %s508 = smul.addr %s507, 8
        %s509 = scalar_lea.vmem %s9, %s508
        %v510 = vld [vmem:[%s0] sm:$0xff]
        %v511 = vld [vmem:[%s412] sm:$0xff]
        %v512 = vld [vmem:[%s412 + $0x8] sm:$0xff]
        %v513 = vld [vmem:[%s412 + $0x10] sm:$0xff]
        %v514 = vld [vmem:[%s412 + $0x18] sm:$0xff]
        %v515 = vld [vmem:[%s412 + $0x20] sm:$0xff]
        %v516 = vld [vmem:[%s412 + $0x28] sm:$0xff]
        %v517 = vld [vmem:[%s412 + $0x30] sm:$0xff]
        %v518 = vld [vmem:[%s412 + $0x38] sm:$0xff]
        %v519 = vld [vmem:[%s412 + $0x40] sm:$0xff]
        %v520 = vld [vmem:[%s412 + $0x48] sm:$0xff]
        %v521 = vld [vmem:[%s412 + $0x50] sm:$0xff]
        %v522 = vld [vmem:[%s412 + $0x58] sm:$0xff]
        %v523 = vld [vmem:[%s412 + $0x60] sm:$0xff]
        %v524 = vld [vmem:[%s412 + $0x68] sm:$0xff]
        %v525 = vld [vmem:[%s412 + $0x70] sm:$0xff]
        %v526 = vld [vmem:[%s412 + $0x78] sm:$0xff]
        %v527 = vld [vmem:[%s1] sm:$0xff]
        %v528 = vld [vmem:[%s421] sm:$0xff]
        %v529 = vld [vmem:[%s421 + $0x8] sm:$0xff]
        %v530 = vld [vmem:[%s421 + $0x10] sm:$0xff]
        %v531 = vld [vmem:[%s421 + $0x18] sm:$0xff]
        %v532 = vld [vmem:[%s421 + $0x20] sm:$0xff]
        %v533 = vld [vmem:[%s421 + $0x28] sm:$0xff]
        %v534 = vld [vmem:[%s421 + $0x30] sm:$0xff]
        %v535 = vld [vmem:[%s421 + $0x38] sm:$0xff]
        %v536 = vld [vmem:[%s421 + $0x40] sm:$0xff]
        %v537 = vld [vmem:[%s421 + $0x48] sm:$0xff]
        %v538 = vld [vmem:[%s421 + $0x50] sm:$0xff]
        %v539 = vld [vmem:[%s421 + $0x58] sm:$0xff]
        %v540 = vld [vmem:[%s421 + $0x60] sm:$0xff]
        %v541 = vld [vmem:[%s421 + $0x68] sm:$0xff]
        %v542 = vld [vmem:[%s421 + $0x70] sm:$0xff]
        %v543 = vld [vmem:[%s421 + $0x78] sm:$0xff]
        %544 = vmatprep.subr.mxu0 0.0
        %545 = vmatpush1.msra.mxu0 %v528
        %546 = vmatprep.subr.mxu0 0.0
        %547 = vmatpush1.msra.mxu0 %v529
        %548 = vmatprep.subr.mxu0 0.0
        %549 = vmatpush1.msra.mxu0 %v530
        %550 = vmatprep.subr.mxu0 0.0
        %551 = vmatpush1.msra.mxu0 %v531
        %552 = vmatprep.subr.mxu0 0.0
        %553 = vmatpush1.msra.mxu0 %v532
        %554 = vmatprep.subr.mxu0 0.0
        %555 = vmatpush1.msra.mxu0 %v533
        %556 = vmatprep.subr.mxu0 0.0
        %557 = vmatpush1.msra.mxu0 %v534
        %558 = vmatprep.subr.mxu0 0.0
        %559 = vmatpush1.msra.mxu0 %v535
        %560 = vmatprep.subr.mxu0 0.0
        %561 = vmatpush1.msra.mxu0 %v536
        %562 = vmatprep.subr.mxu0 0.0
        %563 = vmatpush1.msra.mxu0 %v537
        %564 = vmatprep.subr.mxu0 0.0
        %565 = vmatpush1.msra.mxu0 %v538
        %566 = vmatprep.subr.mxu0 0.0
        %567 = vmatpush1.msra.mxu0 %v539
        %568 = vmatprep.subr.mxu0 0.0
        %569 = vmatpush1.msra.mxu0 %v540
        %570 = vmatprep.subr.mxu0 0.0
        %571 = vmatpush1.msra.mxu0 %v541
        %572 = vmatprep.subr.mxu0 0.0
        %573 = vmatpush1.msra.mxu0 %v542
        %574 = vmatprep.subr.mxu0 0.0
        %575 = vmatpush1.msra.mxu0 %v543
        %576 = vmatprep.subr.mxu0 0.0
        %577 = vmatpush1.msra.mxu0 0.0
        %578 = vmatprep.subr.mxu0 0.0
        %579 = vmatpush1.msra.mxu0 0.0
        %580 = vmatprep.subr.mxu0 0.0
        %581 = vmatpush1.msra.mxu0 0.0
        %582 = vmatprep.subr.mxu0 0.0
        %583 = vmatpush1.msra.mxu0 0.0
        %584 = vmatprep.subr.mxu0 0.0
        %585 = vmatpush1.msra.mxu0 0.0
        %586 = vmatprep.subr.mxu0 0.0
        %587 = vmatpush1.msra.mxu0 0.0
        %588 = vmatprep.subr.mxu0 0.0
        %589 = vmatpush1.msra.mxu0 0.0
        %590 = vmatprep.subr.mxu0 0.0
        %591 = vmatpush1.msra.mxu0 0.0
        %592 = vmatprep.subr.mxu0 0.0
        %593 = vmatpush1.msra.mxu0 0.0
        %594 = vmatprep.subr.mxu0 0.0
        %595 = vmatpush1.msra.mxu0 0.0
        %596 = vmatprep.subr.mxu0 0.0
        %597 = vmatpush1.msra.mxu0 0.0
        %598 = vmatprep.subr.mxu0 0.0
        %599 = vmatpush1.msra.mxu0 0.0
        %600 = vmatprep.subr.mxu0 0.0
        %601 = vmatpush1.msra.mxu0 0.0
        %602 = vmatprep.subr.mxu0 0.0
        %603 = vmatpush1.msra.mxu0 0.0
        %604 = vmatprep.subr.mxu0 0.0
        %605 = vmatpush1.msra.mxu0 0.0
        %606 = vmatprep.subr.mxu0 0.0
        %607 = vmatpush1.msra.mxu0 0.0
        %608 = vmatprep.mubr.f32.mxu0 0.0
        %609 = vmatmul.mubr.f32.gmra.mrb[0].mxu0 %v527
        %v610 = vpop.f32.mrb[0].mxu0
        %v611 = vadd.f32 0.0, %v610
        %v612 = vpop.f32.mrb[0].mxu0
        %613 = vdwg.mxu0
        %614 = vmatprep.subr.mxu0 0.0
        %615 = vmatpush1.msra.mxu0 %v511
        %616 = vmatprep.subr.mxu0 0.0
        %617 = vmatpush1.msra.mxu0 %v512
        %618 = vmatprep.subr.mxu0 0.0
        %619 = vmatpush1.msra.mxu0 %v513
        %620 = vmatprep.subr.mxu0 0.0
        %621 = vmatpush1.msra.mxu0 %v514
        %622 = vmatprep.subr.mxu0 0.0
        %623 = vmatpush1.msra.mxu0 %v515
        %624 = vmatprep.subr.mxu0 0.0
        %625 = vmatpush1.msra.mxu0 %v516
        %626 = vmatprep.subr.mxu0 0.0
        %627 = vmatpush1.msra.mxu0 %v517
        %628 = vmatprep.subr.mxu0 0.0
        %629 = vmatpush1.msra.mxu0 %v518
        %630 = vmatprep.subr.mxu0 0.0
        %631 = vmatpush1.msra.mxu0 %v519
        %632 = vmatprep.subr.mxu0 0.0
        %633 = vmatpush1.msra.mxu0 %v520
        %634 = vmatprep.subr.mxu0 0.0
        %635 = vmatpush1.msra.mxu0 %v521
        %636 = vmatprep.subr.mxu0 0.0
        %637 = vmatpush1.msra.mxu0 %v522
        %638 = vmatprep.subr.mxu0 0.0
        %639 = vmatpush1.msra.mxu0 %v523
        %640 = vmatprep.subr.mxu0 0.0
        %641 = vmatpush1.msra.mxu0 %v524
        %642 = vmatprep.subr.mxu0 0.0
        %643 = vmatpush1.msra.mxu0 %v525
        %644 = vmatprep.subr.mxu0 0.0
        %645 = vmatpush1.msra.mxu0 %v526
        %646 = vmatprep.subr.mxu0 0.0
        %647 = vmatpush1.msra.mxu0 0.0
        %648 = vmatprep.subr.mxu0 0.0
        %649 = vmatpush1.msra.mxu0 0.0
        %650 = vmatprep.subr.mxu0 0.0
        %651 = vmatpush1.msra.mxu0 0.0
        %652 = vmatprep.subr.mxu0 0.0
        %653 = vmatpush1.msra.mxu0 0.0
        %654 = vmatprep.subr.mxu0 0.0
        %655 = vmatpush1.msra.mxu0 0.0
        %656 = vmatprep.subr.mxu0 0.0
        %657 = vmatpush1.msra.mxu0 0.0
        %658 = vmatprep.subr.mxu0 0.0
        %659 = vmatpush1.msra.mxu0 0.0
        %660 = vmatprep.subr.mxu0 0.0
        %661 = vmatpush1.msra.mxu0 0.0
        %662 = vmatprep.subr.mxu0 0.0
        %663 = vmatpush1.msra.mxu0 0.0
        %664 = vmatprep.subr.mxu0 0.0
        %665 = vmatpush1.msra.mxu0 0.0
        %666 = vmatprep.subr.mxu0 0.0
        %667 = vmatpush1.msra.mxu0 0.0
        %668 = vmatprep.subr.mxu0 0.0
        %669 = vmatpush1.msra.mxu0 0.0
        %670 = vmatprep.subr.mxu0 0.0
        %671 = vmatpush1.msra.mxu0 0.0
        %672 = vmatprep.subr.mxu0 0.0
        %673 = vmatpush1.msra.mxu0 0.0
        %674 = vmatprep.subr.mxu0 0.0
        %675 = vmatpush1.msra.mxu0 0.0
        %676 = vmatprep.subr.mxu0 0.0
        %677 = vmatpush1.msra.mxu0 0.0
        %678 = vmatprep.mubr.f32.mxu0 0.0
        %679 = vmatmul.mubr.f32.gmra.mrb[0].mxu0 %v510
        %v680 = vpop.f32.mrb[0].mxu0
        %v681 = vadd.f32 %v611, %v680
        %v682 = vpop.f32.mrb[0].mxu0
        %683 = vdwg.mxu0
        %v684 = vld [vmem:[%s499] sm:$0x1]
        %v686 = vlaneseq
        %v687 = vshrl.u32 %v686, 7
        %v688 = vsub.s32 0, %v687
        %v689 = vrot.slane %v684, %v688
        %v691 = vadd.f32 %v681, %v689
        %v692 = vmax.f32 %v691, 0.0
        %v693 = vld [vmem:[%s430] sm:$0xff]
        %v694 = vld [vmem:[%s430 + $0x8] sm:$0xff]
        %v695 = vld [vmem:[%s430 + $0x10] sm:$0xff]
        %v696 = vld [vmem:[%s430 + $0x18] sm:$0xff]
        %v697 = vld [vmem:[%s430 + $0x20] sm:$0xff]
        %v698 = vld [vmem:[%s430 + $0x28] sm:$0xff]
        %v699 = vld [vmem:[%s430 + $0x30] sm:$0xff]
        %v700 = vld [vmem:[%s430 + $0x38] sm:$0xff]
        %v701 = vld [vmem:[%s430 + $0x40] sm:$0xff]
        %v702 = vld [vmem:[%s430 + $0x48] sm:$0xff]
        %v703 = vld [vmem:[%s430 + $0x50] sm:$0xff]
        %v704 = vld [vmem:[%s430 + $0x58] sm:$0xff]
        %v705 = vld [vmem:[%s430 + $0x60] sm:$0xff]
        %v706 = vld [vmem:[%s430 + $0x68] sm:$0xff]
        %v707 = vld [vmem:[%s430 + $0x70] sm:$0xff]
        %v708 = vld [vmem:[%s430 + $0x78] sm:$0xff]
        %v709 = vld [vmem:[%s502] sm:$0x1]
        %v711 = vlaneseq
        %v712 = vshrl.u32 %v711, 7
        %v713 = vsub.s32 0, %v712
        %v714 = vrot.slane %v709, %v713
        %716 = vmatprep.subr.mxu0 0.0
        %717 = vmatpush1.msra.mxu0 %v693
        %718 = vmatprep.subr.mxu0 0.0
        %719 = vmatpush1.msra.mxu0 %v694
        %720 = vmatprep.subr.mxu0 0.0
        %721 = vmatpush1.msra.mxu0 %v695
        %722 = vmatprep.subr.mxu0 0.0
        %723 = vmatpush1.msra.mxu0 %v696
        %724 = vmatprep.subr.mxu0 0.0
        %725 = vmatpush1.msra.mxu0 %v697
        %726 = vmatprep.subr.mxu0 0.0
        %727 = vmatpush1.msra.mxu0 %v698
        %728 = vmatprep.subr.mxu0 0.0
        %729 = vmatpush1.msra.mxu0 %v699
        %730 = vmatprep.subr.mxu0 0.0
        %731 = vmatpush1.msra.mxu0 %v700
        %732 = vmatprep.subr.mxu0 0.0
        %733 = vmatpush1.msra.mxu0 %v701
        %734 = vmatprep.subr.mxu0 0.0
        %735 = vmatpush1.msra.mxu0 %v702
        %736 = vmatprep.subr.mxu0 0.0
        %737 = vmatpush1.msra.mxu0 %v703
        %738 = vmatprep.subr.mxu0 0.0
        %739 = vmatpush1.msra.mxu0 %v704
        %740 = vmatprep.subr.mxu0 0.0
        %741 = vmatpush1.msra.mxu0 %v705
        %742 = vmatprep.subr.mxu0 0.0
        %743 = vmatpush1.msra.mxu0 %v706
        %744 = vmatprep.subr.mxu0 0.0
        %745 = vmatpush1.msra.mxu0 %v707
        %746 = vmatprep.subr.mxu0 0.0
        %747 = vmatpush1.msra.mxu0 %v708
        %748 = vmatprep.subr.mxu0 0.0
        %749 = vmatpush1.msra.mxu0 0.0
        %750 = vmatprep.subr.mxu0 0.0
        %751 = vmatpush1.msra.mxu0 0.0
        %752 = vmatprep.subr.mxu0 0.0
        %753 = vmatpush1.msra.mxu0 0.0
        %754 = vmatprep.subr.mxu0 0.0
        %755 = vmatpush1.msra.mxu0 0.0
        %756 = vmatprep.subr.mxu0 0.0
        %757 = vmatpush1.msra.mxu0 0.0
        %758 = vmatprep.subr.mxu0 0.0
        %759 = vmatpush1.msra.mxu0 0.0
        %760 = vmatprep.subr.mxu0 0.0
        %761 = vmatpush1.msra.mxu0 0.0
        %762 = vmatprep.subr.mxu0 0.0
        %763 = vmatpush1.msra.mxu0 0.0
        %764 = vmatprep.subr.mxu0 0.0
        %765 = vmatpush1.msra.mxu0 0.0
        %766 = vmatprep.subr.mxu0 0.0
        %767 = vmatpush1.msra.mxu0 0.0
        %768 = vmatprep.subr.mxu0 0.0
        %769 = vmatpush1.msra.mxu0 0.0
        %770 = vmatprep.subr.mxu0 0.0
        %771 = vmatpush1.msra.mxu0 0.0
        %772 = vmatprep.subr.mxu0 0.0
        %773 = vmatpush1.msra.mxu0 0.0
        %774 = vmatprep.subr.mxu0 0.0
        %775 = vmatpush1.msra.mxu0 0.0
        %776 = vmatprep.subr.mxu0 0.0
        %777 = vmatpush1.msra.mxu0 0.0
        %778 = vmatprep.subr.mxu0 0.0
        %779 = vmatpush1.msra.mxu0 0.0
        %780 = vmatprep.mubr.f32.mxu0 0.0
        %781 = vmatmul.mubr.f32.gmra.mrb[0].mxu0 %v692
        %v782 = vpop.f32.mrb[0].mxu0
        %v783 = vadd.f32 %v714, %v782
        %v784 = vpop.f32.mrb[0].mxu0
        %785 = vdwg.mxu0
        %v786 = vmax.f32 %v783, 0.0
        %v787 = vld [vmem:[%s439] sm:$0xff]
        %v788 = vld [vmem:[%s439 + $0x8] sm:$0xff]
        %v789 = vld [vmem:[%s439 + $0x10] sm:$0xff]
        %v790 = vld [vmem:[%s439 + $0x18] sm:$0xff]
        %v791 = vld [vmem:[%s439 + $0x20] sm:$0xff]
        %v792 = vld [vmem:[%s439 + $0x28] sm:$0xff]
        %v793 = vld [vmem:[%s439 + $0x30] sm:$0xff]
        %v794 = vld [vmem:[%s439 + $0x38] sm:$0xff]
        %v795 = vld [vmem:[%s439 + $0x40] sm:$0xff]
        %v796 = vld [vmem:[%s439 + $0x48] sm:$0xff]
        %v797 = vld [vmem:[%s439 + $0x50] sm:$0xff]
        %v798 = vld [vmem:[%s439 + $0x58] sm:$0xff]
        %v799 = vld [vmem:[%s439 + $0x60] sm:$0xff]
        %v800 = vld [vmem:[%s439 + $0x68] sm:$0xff]
        %v801 = vld [vmem:[%s439 + $0x70] sm:$0xff]
        %v802 = vld [vmem:[%s439 + $0x78] sm:$0xff]
        %v803 = vld [vmem:[%s505] sm:$0x1]
        %v805 = vlaneseq
        %v806 = vshrl.u32 %v805, 7
        %v807 = vsub.s32 0, %v806
        %v808 = vrot.slane %v803, %v807
        %810 = vmatprep.subr.mxu0 0.0
        %811 = vmatpush1.msra.mxu0 %v787
        %812 = vmatprep.subr.mxu0 0.0
        %813 = vmatpush1.msra.mxu0 %v788
        %814 = vmatprep.subr.mxu0 0.0
        %815 = vmatpush1.msra.mxu0 %v789
        %816 = vmatprep.subr.mxu0 0.0
        %817 = vmatpush1.msra.mxu0 %v790
        %818 = vmatprep.subr.mxu0 0.0
        %819 = vmatpush1.msra.mxu0 %v791
        %820 = vmatprep.subr.mxu0 0.0
        %821 = vmatpush1.msra.mxu0 %v792
        %822 = vmatprep.subr.mxu0 0.0
        %823 = vmatpush1.msra.mxu0 %v793
        %824 = vmatprep.subr.mxu0 0.0
        %825 = vmatpush1.msra.mxu0 %v794
        %826 = vmatprep.subr.mxu0 0.0
        %827 = vmatpush1.msra.mxu0 %v795
        %828 = vmatprep.subr.mxu0 0.0
        %829 = vmatpush1.msra.mxu0 %v796
        %830 = vmatprep.subr.mxu0 0.0
        %831 = vmatpush1.msra.mxu0 %v797
        %832 = vmatprep.subr.mxu0 0.0
        %833 = vmatpush1.msra.mxu0 %v798
        %834 = vmatprep.subr.mxu0 0.0
        %835 = vmatpush1.msra.mxu0 %v799
        %836 = vmatprep.subr.mxu0 0.0
        %837 = vmatpush1.msra.mxu0 %v800
        %838 = vmatprep.subr.mxu0 0.0
        %839 = vmatpush1.msra.mxu0 %v801
        %840 = vmatprep.subr.mxu0 0.0
        %841 = vmatpush1.msra.mxu0 %v802
        %842 = vmatprep.subr.mxu0 0.0
        %843 = vmatpush1.msra.mxu0 0.0
        %844 = vmatprep.subr.mxu0 0.0
        %845 = vmatpush1.msra.mxu0 0.0
        %846 = vmatprep.subr.mxu0 0.0
        %847 = vmatpush1.msra.mxu0 0.0
        %848 = vmatprep.subr.mxu0 0.0
        %849 = vmatpush1.msra.mxu0 0.0
        %850 = vmatprep.subr.mxu0 0.0
        %851 = vmatpush1.msra.mxu0 0.0
        %852 = vmatprep.subr.mxu0 0.0
        %853 = vmatpush1.msra.mxu0 0.0
        %854 = vmatprep.subr.mxu0 0.0
        %855 = vmatpush1.msra.mxu0 0.0
        %856 = vmatprep.subr.mxu0 0.0
        %857 = vmatpush1.msra.mxu0 0.0
        %858 = vmatprep.subr.mxu0 0.0
        %859 = vmatpush1.msra.mxu0 0.0
        %860 = vmatprep.subr.mxu0 0.0
        %861 = vmatpush1.msra.mxu0 0.0
        %862 = vmatprep.subr.mxu0 0.0
        %863 = vmatpush1.msra.mxu0 0.0
        %864 = vmatprep.subr.mxu0 0.0
        %865 = vmatpush1.msra.mxu0 0.0
        %866 = vmatprep.subr.mxu0 0.0
        %867 = vmatpush1.msra.mxu0 0.0
        %868 = vmatprep.subr.mxu0 0.0
        %869 = vmatpush1.msra.mxu0 0.0
        %870 = vmatprep.subr.mxu0 0.0
        %871 = vmatpush1.msra.mxu0 0.0
        %872 = vmatprep.subr.mxu0 0.0
        %873 = vmatpush1.msra.mxu0 0.0
        %874 = vmatprep.mubr.f32.mxu0 0.0
        %875 = vmatmul.mubr.f32.gmra.mrb[0].mxu0 %v786
        %v876 = vpop.f32.mrb[0].mxu0
        %v877 = vadd.f32 %v808, %v876
        %v878 = vpop.f32.mrb[0].mxu0
        %879 = vdwg.mxu0
        %880 = vst [vmem:[%s509] sm:$0xff] %v877
        %p881 = scmp.lt.s32.totalorder %s29, 4
        %s882 = scalar_select %p881, %s29, 4
        %s883 = smul.addr %s882, 8
        %s884 = scalar_lea.vmem %s9, %s883
        // Predicated region
        $region73: #{critic_slac_forward.1} parent=55 // pred_check
          %p885 = pneg %p271
        $region74: #{critic_slac_forward.1} parent=55 // pred_check_branch
          %887 = sbr.rel (%p885) target = $region76
        $region75: #{critic_slac_forward.1} parent=55 // pred_region
          _
        $region76: #{critic_slac_forward.1} parent=55 // pred_fallthru
          _
      $region56: #{critic_slac_forward.1} parent=5 // pred_fallthru
        _
      %p888 = scmp.le.s32.totalorder 2, %s24
      // Predicated region
      $region77: #{critic_slac_forward.1} parent=5 // pred_check
        %p889 = pneg %p888
      $region78: #{critic_slac_forward.1} parent=5 // pred_check_branch
        %891 = sbr.rel (%p889) target = $region80
      $region79: #{critic_slac_forward.1} parent=5 // pred_region
        %s892 = ssub.s32 %s24, 2
        // Predicated region
        $region81: #{critic_slac_forward.1} parent=79 // pred_check
          %p893 = pneg %p277
        $region82: #{critic_slac_forward.1} parent=79 // pred_check_branch
          %895 = sbr.rel (%p893) target = $region84
        $region83: #{critic_slac_forward.1} parent=79 // pred_region
          %p896 = scmp.lt.s32.totalorder %s30, 4
          %s897 = scalar_select %p896, %s30, 4
          %s898 = smul.addr %s897, 8
          %s899 = scalar_lea.vmem %s9, %s898
        $region84: #{critic_slac_forward.1} parent=79 // pred_fallthru
          _
      $region80: #{critic_slac_forward.1} parent=5 // pred_fallthru
        _
    $region6: #{critic_slac_forward.1} parent=1 // loop_footer
      %s28 = sadd.s32 1, %s24
    $region7: #{critic_slac_forward.1} parent=1 // loop_footer_branch
      %23 = sbr.rel target = $region3
    $region8: #{critic_slac_forward.1} parent=1 // loop_exit
      _
    %900 = vsyncpa [#allocation3], 1
    %s901 = scalar_lea.sflag [#allocation3], 1
    %902 = vsyncpa %s901, 1
    %903 = vsyncpa [#allocation5], 1
    %s904 = scalar_lea.sflag [#allocation5], 1
    %905 = vsyncpa %s904, 1
    %906 = vsyncpa [#allocation8], 1
    %s907 = scalar_lea.sflag [#allocation8], 1
    %908 = vsyncpa %s907, 1

</llo_original>
